<compile_context>
chip_gen: v7x
topology: tpu7x:2x2x1
jax: 0.10.0
libtpu: 0.0.40
codegen_flags: <defaults>
</compile_context>

<pallas_src>
import math
import numpy as np
import jax
import jax.numpy as jnp
from jax.experimental import pallas as pl
from jax.experimental.pallas import tpu as pltpu


# ----------------------------- configuration (the PyTorch `args`) -----------------------------
class Args:
    t_sample_size = 8     # T (multiplies the per-entity channel count)
    hid_dim = 32          # MLP hidden size
    num_layers = 2        # -> one MLP layer (Linear + LayerNorm + ELU)
    dropout = 0.1         # eval mode -> identity
    pred = "y_atk"


# ----------------------------------------- helpers --------------------------------------------
def build_pool_matrix(entity2squad_idx, S):
    """(S, N) per-squad mean-pool matrix (empty squads guarded against div-by-zero)."""
    onehot = jax.nn.one_hot(jnp.asarray(entity2squad_idx), S, dtype=jnp.float32).T   # (S, N)
    counts = jnp.maximum(onehot.sum(-1, keepdims=True), 1.0)
    return onehot / counts


# ------------------------------------------ factory --------------------------------------------
def make_mlp_classifier(params, entity2squad_idx, squad2squad_idx, *, B, T, N, C, S):
    """Builds a jitted forward(x) for MLP_Classifier.  All constants hoisted/cached here."""
    F = T * C
    H = params["mlp_w"].shape[0]
    P = squad2squad_idx.shape[1]
    assert P == S * S

    # In-kernel pair construction assumes the full row-major S x S cross product, which is
    # exactly what the module's .view(B, S, S) assumes as well.
    # TODO(synk): an arbitrary squad2squad_idx ordering would need an in-kernel gather instead.
    idx0 = np.asarray(squad2squad_idx[0])
    idx1 = np.asarray(squad2squad_idx[1])
    assert np.array_equal(idx0, np.repeat(np.arange(S), S))
    assert np.array_equal(idx1, np.tile(np.arange(S), S))

    # --- constants built ONCE (grid-resident inside the kernel) ---
    pool = build_pool_matrix(entity2squad_idx, S)                              # (S, N)
    b2 = jnp.broadcast_to(params["atk_b"].reshape(1, 1).astype(jnp.float32), (1, H))
    w_slab = jnp.concatenate(
        [
            params["mlp_w"].T.astype(jnp.float32),                             # rows [0, F)
            params["mlp_b"].reshape(1, H).astype(jnp.float32),                 # row F
            params["mlp_ln_g"].reshape(1, H).astype(jnp.float32),              # row F+1
            params["mlp_ln_b"].reshape(1, H).astype(jnp.float32),              # row F+2
            params["atk_w"].reshape(1, H).astype(jnp.float32),                 # row F+3
            b2,                                                                # row F+4
        ],
        axis=0,
    )                                                                          # (F+5, H)

    # --------------------------------------- kernel -------------------------------------------
    def kernel(pool_ref, x_ref, w_ref, o_ref):
        """One batch item per grid step; whole working set VMEM-resident.

        pool_ref: (S, N)    mean-pool matrix (resident)
        x_ref   : (N, F)    this batch item's flattened entity features
        w_ref   : (F+5, H)  packed [w1 | b1 | ln_g | ln_b | w2 | b2] slab (resident)
        o_ref   : (S, S)    sigmoid attack probabilities for this batch item
        """
        pooled = jnp.dot(pool_ref[...], x_ref[...],
                         preferred_element_type=jnp.float32)                   # (S, F)

        w1 = w_ref[0:F, :]                                                     # (F, H)
        b1 = w_ref[F:F + 1, :]                                                 # (1, H)
        ln_g = w_ref[F + 1:F + 2, :]                                           # (1, H)
        ln_b = w_ref[F + 2:F + 3, :]                                           # (1, H)
        w2 = w_ref[F + 3:F + 4, :]                                             # (1, H)
        b2v = w_ref[F + 4:F + 5, 0:1]                                          # (1, 1)

        # MLP layer: Linear -> LayerNorm -> ELU  (Dropout = identity in eval mode)
        h = jnp.dot(pooled, w1, preferred_element_type=jnp.float32) + b1       # (S, H)
        mu = jnp.mean(h, axis=-1, keepdims=True)
        var = jnp.mean((h - mu) ** 2, axis=-1, keepdims=True)
        hn = (h - mu) * jax.lax.rsqrt(var + 1e-5) * ln_g + ln_b
        act = jnp.where(hn > 0, hn, jnp.exp(jnp.minimum(hn, 0.0)) - 1.0)       # ELU(alpha=1)

        # Full S x S pair product on the VPU (no gather matmuls):
        pair = act.reshape(S, 1, H) * act.reshape(1, S, H)                     # (S, S, H)
        # Linear(H -> 1) as multiply + lane reduction (no N=1 MXU round trip):
        logit = jnp.sum(pair * w2.reshape(1, 1, H), axis=-1) + b2v             # (S, S)
        o_ref[...] = jax.nn.sigmoid(logit)

    call = pl.pallas_call(
        kernel,
        out_shape=jax.ShapeDtypeStruct((B, S, S), jnp.float32),
        grid=(B,),
        in_specs=[
            pl.BlockSpec((S, N), lambda b: (0, 0)),            # resident across grid
            pl.BlockSpec((None, N, F), lambda b: (b, 0, 0)),   # per-batch slice of x
            pl.BlockSpec((F + 5, H), lambda b: (0, 0)),        # resident packed weights
        ],
        out_specs=pl.BlockSpec((None, S, S), lambda b: (b, 0, 0)),
        compiler_params=pltpu.CompilerParams(dimension_semantics=("parallel",)),
    )

    @jax.jit
    def forward(x):
        # torch: x = x.reshape(x.size(0), x.size(2), -1)  (raw row-major reshape, mixes T & N)
        x_flat = x.reshape(B, N, F).astype(jnp.float32)
        atk_prob = call(pool, x_flat, w_slab)                  # (B, S, S)
        return None, atk_prob                                  # (int_prob, atk_prob), pred == 'y_atk'

    return forward


# ------------------------------------- pure-JAX reference -------------------------------------
def _layernorm(x, g, b, eps=1e-5):
    mu = x.mean(-1, keepdims=True)
    var = ((x - mu) ** 2).mean(-1, keepdims=True)
    return (x - mu) * jax.lax.rsqrt(var + eps) * g + b


def reference_forward(x, entity2squad_idx, squad2squad_idx, params, S):
    B, T, N, C = x.shape
    xr = x.reshape(B, N, T * C)                                    # raw reshape, matches torch
    pool = build_pool_matrix(entity2squad_idx, S)                  # entity2squad_pool (mean)
    pooled = jnp.einsum("sn,bnf->bsf", pool, xr)                   # (B, S, F)
    # MLP: Dropout(id) -> Linear -> LayerNorm -> ELU
    h = pooled @ params["mlp_w"].T + params["mlp_b"]
    h = _layernorm(h, params["mlp_ln_g"], params["mlp_ln_b"])
    h = jnp.where(h > 0, h, jnp.exp(jnp.minimum(h, 0.0)) - 1.0)
    # Classifiers (y_atk): pair product -> Dropout(id) -> Linear -> Sigmoid
    pair = h[:, squad2squad_idx[0], :] * h[:, squad2squad_idx[1], :]
    atk = jax.nn.sigmoid(jnp.einsum("bph,oh->bpo", pair, params["atk_w"]) + params["atk_b"])
    return None, atk.reshape(B, S, S)


# --------------------------------------------- main -------------------------------------------
if __name__ == "__main__":
    args = Args()
    B, T, N, C = 2, args.t_sample_size, 16, 4          # F = T*C = 32
    H = args.hid_dim
    out_channels = 3                                    # int_pred classes (unused, pred='y_atk')
    S = 4                                               # squads (static; no device->host sync)
    F = T * C

    key = jax.random.PRNGKey(0)
    ks = jax.random.split(key, 8)

    def uni(k, shape, bound):
        return jax.random.uniform(k, shape, jnp.float32, -bound, bound)

    params = {
        # MLP layer: Linear(F -> H) + LayerNorm(H) + ELU
        "mlp_w": uni(ks[0], (H, F), 1.0 / math.sqrt(F)),
        "mlp_b": uni(ks[1], (H,), 1.0 / math.sqrt(F)),
        "mlp_ln_g": 1.0 + 0.1 * jax.random.normal(ks[2], (H,), jnp.float32),
        "mlp_ln_b": 0.1 * jax.random.normal(ks[3], (H,), jnp.float32),
        # atk_pred: Linear(H -> 1) + Sigmoid
        "atk_w": uni(ks[4], (1, H), 1.0 / math.sqrt(H)),
        "atk_b": uni(ks[5], (1,), 1.0 / math.sqrt(H)),
        # int_pred (Linear(H, out_channels)) exists in the module but is unused when pred == 'y_atk'.
        "int_w": jnp.zeros((out_channels, H), jnp.float32),
        "int_b": jnp.zeros((out_channels,), jnp.float32),
    }

    x = jax.random.normal(jax.random.PRNGKey(0), (B, T, N, C), jnp.float32)
    entity2squad_idx = jnp.repeat(jnp.arange(S, dtype=jnp.int32), N // S)            # (N,)
    squad2squad_idx = jnp.stack([jnp.repeat(jnp.arange(S, dtype=jnp.int32), S),
                                 jnp.tile(jnp.arange(S, dtype=jnp.int32), S)])       # (2, S*S)

    forward = make_mlp_classifier(params, entity2squad_idx, squad2squad_idx,
                                  B=B, T=T, N=N, C=C, S=S)

    int_prob, atk_prob = forward(x)
    atk_prob = jax.block_until_ready(atk_prob)

    _, atk_ref = reference_forward(x, entity2squad_idx, squad2squad_idx, params, S)
    atk_ref = jax.block_until_ready(atk_ref)

    assert int_prob is None
    assert atk_prob.shape == (B, S, S)
    assert jnp.allclose(atk_prob, atk_ref, rtol=2e-3, atol=2e-3), (
        float(jnp.max(jnp.abs(atk_prob - atk_ref))))
    print("KERNEL_OK")
</pallas_src>

<mosaic_0001>
module attributes {stable_mosaic.version = 11 : i64} {
  func.func @kernel(%arg0: i32, %arg1: memref<4x16xf32, #tpu.memory_space<vmem>>, %arg2: memref<1x16x32xf32, #tpu.memory_space<vmem>>, %arg3: memref<37x32xf32, #tpu.memory_space<vmem>>, %arg4: memref<1x4x4xf32, #tpu.memory_space<vmem>>) attributes {dimension_semantics = [#tpu.dimension_semantics<parallel>], iteration_bounds = array<i64: 2>, scalar_prefetch = 0 : i64, scratch_operands = 0 : i64, tpu.core_type = #tpu.core_type<tc>, window_params = [{pipeline_mode = #tpu.pipeline_mode<synchronous>, transform_indices = @transform_0, window_bounds = array<i64: 4, 16>}, {transform_indices = @transform_1, window_bounds = array<i64: 1, 16, 32>}, {pipeline_mode = #tpu.pipeline_mode<synchronous>, transform_indices = @transform_2, window_bounds = array<i64: 37, 32>}, {transform_indices = @transform_3, window_bounds = array<i64: 1, 4, 4>}]} {
    %c0 = arith.constant 0 : index
    %c0_0 = arith.constant 0 : index
    %0 = vector.load %arg1[%c0, %c0_0] : memref<4x16xf32, #tpu.memory_space<vmem>>, vector<4x16xf32>
    %c0_1 = arith.constant 0 : index
    %c0_2 = arith.constant 0 : index
    %c0_3 = arith.constant 0 : index
    %1 = vector.load %arg2[%c0_1, %c0_2, %c0_3] : memref<1x16x32xf32, #tpu.memory_space<vmem>>, vector<1x16x32xf32>
    %2 = vector.shape_cast %1 : vector<1x16x32xf32> to vector<16x32xf32>
    %cst = arith.constant dense<0.000000e+00> : vector<4x32xf32>
    %3 = tpu.matmul %0, %2, %cst {dimension_numbers = #tpu.dot_dimension_numbers<[1], [0], [0], [1], [0, 0, 1, 1], [], []>} : vector<4x16xf32>, vector<16x32xf32>, vector<4x32xf32> -> vector<4x32xf32>
    %c0_4 = arith.constant 0 : index
    %c0_5 = arith.constant 0 : index
    %4 = vector.load %arg3[%c0_4, %c0_5] : memref<37x32xf32, #tpu.memory_space<vmem>>, vector<32x32xf32>
    %c32 = arith.constant 32 : index
    %c0_6 = arith.constant 0 : index
    %5 = vector.load %arg3[%c32, %c0_6] : memref<37x32xf32, #tpu.memory_space<vmem>>, vector<1x32xf32>
    %c33 = arith.constant 33 : index
    %c0_7 = arith.constant 0 : index
    %6 = vector.load %arg3[%c33, %c0_7] : memref<37x32xf32, #tpu.memory_space<vmem>>, vector<1x32xf32>
    %c34 = arith.constant 34 : index
    %c0_8 = arith.constant 0 : index
    %7 = vector.load %arg3[%c34, %c0_8] : memref<37x32xf32, #tpu.memory_space<vmem>>, vector<1x32xf32>
    %c35 = arith.constant 35 : index
    %c0_9 = arith.constant 0 : index
    %8 = vector.load %arg3[%c35, %c0_9] : memref<37x32xf32, #tpu.memory_space<vmem>>, vector<1x32xf32>
    %c36 = arith.constant 36 : index
    %c0_10 = arith.constant 0 : index
    %9 = vector.load %arg3[%c36, %c0_10] : memref<37x32xf32, #tpu.memory_space<vmem>>, vector<1x1xf32>
    %cst_11 = arith.constant dense<0.000000e+00> : vector<4x32xf32>
    %10 = tpu.matmul %3, %4, %cst_11 {dimension_numbers = #tpu.dot_dimension_numbers<[1], [0], [0], [1], [0, 0, 1, 1], [], []>} : vector<4x32xf32>, vector<32x32xf32>, vector<4x32xf32> -> vector<4x32xf32>
    %11 = vector.broadcast %5 : vector<1x32xf32> to vector<4x32xf32>
    %12 = arith.addf %10, %11 : vector<4x32xf32>
    %cst_12 = arith.constant dense<0.000000e+00> : vector<4xf32>
    %13 = vector.multi_reduction <add>, %12, %cst_12 [1] : vector<4x32xf32> to vector<4xf32>
    %14 = vector.shape_cast %13 : vector<4xf32> to vector<4x1xf32>
    %cst_13 = arith.constant 3.200000e+01 : f32
    %15 = vector.broadcast %cst_13 : f32 to vector<4x1xf32>
    %16 = arith.divf %14, %15 : vector<4x1xf32>
    %17 = vector.broadcast %16 : vector<4x1xf32> to vector<4x32xf32>
    %18 = arith.subf %12, %17 : vector<4x32xf32>
    %19 = arith.mulf %18, %18 : vector<4x32xf32>
    %cst_14 = arith.constant dense<0.000000e+00> : vector<4xf32>
    %20 = vector.multi_reduction <add>, %19, %cst_14 [1] : vector<4x32xf32> to vector<4xf32>
    %21 = vector.shape_cast %20 : vector<4xf32> to vector<4x1xf32>
    %cst_15 = arith.constant 3.200000e+01 : f32
    %22 = vector.broadcast %cst_15 : f32 to vector<4x1xf32>
    %23 = arith.divf %21, %22 : vector<4x1xf32>
    %24 = vector.broadcast %16 : vector<4x1xf32> to vector<4x32xf32>
    %25 = arith.subf %12, %24 : vector<4x32xf32>
    %cst_16 = arith.constant 9.99999974E-6 : f32
    %26 = vector.broadcast %cst_16 : f32 to vector<4x1xf32>
    %27 = arith.addf %23, %26 : vector<4x1xf32>
    %28 = math.rsqrt %27 : vector<4x1xf32>
    %29 = vector.broadcast %28 : vector<4x1xf32> to vector<4x32xf32>
    %30 = arith.mulf %25, %29 : vector<4x32xf32>
    %31 = vector.broadcast %6 : vector<1x32xf32> to vector<4x32xf32>
    %32 = arith.mulf %30, %31 : vector<4x32xf32>
    %33 = vector.broadcast %7 : vector<1x32xf32> to vector<4x32xf32>
    %34 = arith.addf %32, %33 : vector<4x32xf32>
    %cst_17 = arith.constant 0.000000e+00 : f32
    %35 = vector.broadcast %cst_17 : f32 to vector<4x32xf32>
    %36 = arith.cmpf ogt, %34, %35 : vector<4x32xf32>
    %cst_18 = arith.constant 0.000000e+00 : f32
    %37 = vector.broadcast %cst_18 : f32 to vector<4x32xf32>
    %38 = arith.minimumf %34, %37 : vector<4x32xf32>
    %39 = math.exp %38 : vector<4x32xf32>
    %cst_19 = arith.constant 1.000000e+00 : f32
    %40 = vector.broadcast %cst_19 : f32 to vector<4x32xf32>
    %41 = arith.subf %39, %40 : vector<4x32xf32>
    %42 = arith.select %36, %34, %41 : vector<4x32xi1>, vector<4x32xf32>
    %43 = vector.shape_cast %42 : vector<4x32xf32> to vector<4x1x32xf32>
    %44 = vector.shape_cast %42 : vector<4x32xf32> to vector<1x4x32xf32>
    %45 = vector.broadcast %43 : vector<4x1x32xf32> to vector<4x4x32xf32>
    %46 = vector.broadcast %44 : vector<1x4x32xf32> to vector<4x4x32xf32>
    %47 = arith.mulf %45, %46 : vector<4x4x32xf32>
    %48 = vector.shape_cast %8 : vector<1x32xf32> to vector<1x1x32xf32>
    %49 = vector.broadcast %48 : vector<1x1x32xf32> to vector<4x4x32xf32>
    %50 = arith.mulf %47, %49 : vector<4x4x32xf32>
    %cst_20 = arith.constant dense<0.000000e+00> : vector<4x4xf32>
    %51 = vector.multi_reduction <add>, %50, %cst_20 [2] : vector<4x4x32xf32> to vector<4x4xf32>
    %52 = vector.broadcast %9 : vector<1x1xf32> to vector<4x4xf32>
    %53 = arith.addf %51, %52 : vector<4x4xf32>
    %54 = arith.negf %53 : vector<4x4xf32>
    %55 = math.exp %54 : vector<4x4xf32>
    %cst_21 = arith.constant 1.000000e+00 : f32
    %56 = vector.broadcast %cst_21 : f32 to vector<4x4xf32>
    %57 = arith.addf %56, %55 : vector<4x4xf32>
    %58 = arith.divf %56, %57 : vector<4x4xf32>
    %c0_22 = arith.constant 0 : index
    %c0_23 = arith.constant 0 : index
    %c0_24 = arith.constant 0 : index
    %59 = vector.load %arg4[%c0_22, %c0_23, %c0_24] : memref<1x4x4xf32, #tpu.memory_space<vmem>>, vector<1x4x4xf32>
    %60 = vector.shape_cast %59 : vector<1x4x4xf32> to vector<4x4xf32>
    %61 = vector.shape_cast %58 : vector<4x4xf32> to vector<1x4x4xf32>
    tpu.vector_store %arg4[%c0_22, %c0_23, %c0_24], %61 {strides = array<i32>} : memref<1x4x4xf32, #tpu.memory_space<vmem>>, vector<1x4x4xf32>,
    return
  }
  func.func @transform_0(%arg0: i32) -> (i32, i32) {
    %c0_i32 = arith.constant 0 : i32
    %c0_i32_0 = arith.constant 0 : i32
    %c0_i32_1 = arith.constant 0 : i32
    return %c0_i32, %c0_i32_0 : i32, i32
  }
  func.func @transform_1(%arg0: i32) -> (i32, i32, i32) {
    %c0_i32 = arith.constant 0 : i32
    %c0_i32_0 = arith.constant 0 : i32
    %c0_i32_1 = arith.constant 0 : i32
    return %arg0, %c0_i32, %c0_i32_0 : i32, i32, i32
  }
  func.func @transform_2(%arg0: i32) -> (i32, i32) {
    %c0_i32 = arith.constant 0 : i32
    %c0_i32_0 = arith.constant 0 : i32
    %c0_i32_1 = arith.constant 0 : i32
    return %c0_i32, %c0_i32_0 : i32, i32
  }
  func.func @transform_3(%arg0: i32) -> (i32, i32, i32) {
    %c0_i32 = arith.constant 0 : i32
    %c0_i32_0 = arith.constant 0 : i32
    %c0_i32_1 = arith.constant 0 : i32
    return %arg0, %c0_i32, %c0_i32_0 : i32, i32, i32
  }
}

</mosaic_0001>

<llo_original>
// kernel: forward.1
$region0: #{forward.1}
  #allocation0 [shape = 'u32[]', space=smem, size = 0x4, offset = 0x4, fixed_abs, tag = 'smem constant byte address 0x4 - core index']
  #allocation1 [shape = 'u32[144,128]{1,0:T(1,128)}', space=vmem, size = 0x12000, scoped, tag = 'internal scratch']
  %s0 = inlined_call_operand.vmem [shape: f32[4,16], index: 0, kind: input, shape index: {}]
  %s1 = inlined_call_operand.vmem [shape: f32[2,16,32], index: 1, kind: input, shape index: {}]
  %s2 = inlined_call_operand.vmem [shape: f32[37,32], index: 2, kind: input, shape index: {}]
  %s3 = inlined_call_operand.hbm [shape: f32[2,4,4], index: 3, kind: output, shape index: {}]
  %s4 = sld [smem:[#allocation0]]
  $region45: #{forward.1} parent=0
    _
  %s6 = ssub.s32 1, %s4
  %s7 = scalar_select 0, %s6, %s4
  $region1: #{forward.1} parent=0
    #allocation2 [shape = 'u8[4096]{0}', space=vmem, size = 0x1000, scoped, tag = 'output window, operand 0']
    #allocation3 [shape = 's32[2]{0}', space=sflag, size = 0x8, scoped, tag = 'scoped memory for forward.1']
    %8 = vsyncpa [#allocation3], 0
    %s9 = scalar_lea.sflag [#allocation3], 1
    %10 = vsyncpa %s9, 0
    loop: start=0, step=1, limit=4
    $region2: #{forward.1} parent=1 // loop_pre_header
      _
    $region3: #{forward.1} parent=1 // loop_header
      %s12 = sphi 0, %s16
      %p13 = scmp.ge.s32.totalorder %s12, 4
      %s20 = sphi 0, %s20
      %s22 = sphi 0, %s20
      %s23 = sphi 0, %s22
      %s37 = sphi 0, %s23
      %s43 = sphi 0, %s45
      %s46 = sphi 0, %s43
      %s47 = sphi 0, %s46
      %s63 = sphi 0, %s47
      %s67 = sphi 0, %s67
      %s69 = sphi 0, %s67
      %s70 = sphi 0, %s69
      %s84 = sphi 0, %s70
      %s90 = sphi 0, %s92
      %s93 = sphi 0, %s90
      %s94 = sphi 0, %s93
      %s110 = sphi 0, %s94
    $region4: #{forward.1} parent=1 // loop_header_branch
      %15 = sbr.rel (%p13) target = $region8
    $region5: #{forward.1} parent=1 // loop_body
      %s17 = ssub.s32 %s12, 1
      %s18 = ssub.s32 %s12, 2
      %s19 = sadd.s32 %s12, 1
      %s21 = sadd.s32 %s20, 1
      %p24 = scmp.eq.s32.totalorder %s12, 1
      %p25 = scmp.ne.s32.totalorder %s20, %s22
      %p26 = scmp.eq.s32.totalorder %s12, 0
      %p27 = por %p25, %p26
      %p28 = scmp.ne.s32.totalorder %s20, %s22
      %p29 = scmp.eq.s32.totalorder %s17, 1
      %p30 = por %p28, %p29
      %p31 = scmp.ne.s32.totalorder %s22, %s23
      %p32 = scmp.eq.s32.totalorder %s17, 0
      %p33 = por %p31, %p32
      %p34 = scmp.ne.s32.totalorder %s22, %s23
      %p35 = scmp.eq.s32.totalorder %s18, 1
      %p36 = por %p34, %p35
      %p38 = scmp.ne.s32.totalorder %s23, %s37
      %p39 = scmp.eq.s32.totalorder %s18, 0
      %p40 = por %p38, %p39
      %s41 = ssub.s32 %s12, %s19
      %p42 = scmp.eq.s32.totalorder %s41, 0
      %s44 = sadd.s32 %s43, 1
      %s45 = scalar_select %p42, %s43, %s44
      %p48 = pneg %p42
      %p49 = scmp.eq.s32.totalorder %s12, 1
      %p50 = por %p48, %p49
      %p51 = scmp.ne.s32.totalorder %s43, %s46
      %p52 = scmp.eq.s32.totalorder %s12, 0
      %p53 = por %p51, %p52
      %p54 = scmp.ne.s32.totalorder %s43, %s46
      %p55 = scmp.eq.s32.totalorder %s17, 1
      %p56 = por %p54, %p55
      %p57 = scmp.ne.s32.totalorder %s46, %s47
      %p58 = scmp.eq.s32.totalorder %s17, 0
      %p59 = por %p57, %p58
      %p60 = scmp.ne.s32.totalorder %s46, %s47
      %p61 = scmp.eq.s32.totalorder %s18, 1
      %p62 = por %p60, %p61
      %p64 = scmp.ne.s32.totalorder %s47, %s63
      %p65 = scmp.eq.s32.totalorder %s18, 0
      %p66 = por %p64, %p65
      %s68 = sadd.s32 %s67, 1
      %p71 = scmp.eq.s32.totalorder %s12, 1
      %p72 = scmp.ne.s32.totalorder %s67, %s69
      %p73 = scmp.eq.s32.totalorder %s12, 0
      %p74 = por %p72, %p73
      %p75 = scmp.ne.s32.totalorder %s67, %s69
      %p76 = scmp.eq.s32.totalorder %s17, 1
      %p77 = por %p75, %p76
      %p78 = scmp.ne.s32.totalorder %s69, %s70
      %p79 = scmp.eq.s32.totalorder %s17, 0
      %p80 = por %p78, %p79
      %p81 = scmp.ne.s32.totalorder %s69, %s70
      %p82 = scmp.eq.s32.totalorder %s18, 1
      %p83 = por %p81, %p82
      %p85 = scmp.ne.s32.totalorder %s70, %s84
      %p86 = scmp.eq.s32.totalorder %s18, 0
      %p87 = por %p85, %p86
      %s88 = ssub.s32 %s12, %s19
      %p89 = scmp.eq.s32.totalorder %s88, 0
      %s91 = sadd.s32 %s90, 1
      %s92 = scalar_select %p89, %s90, %s91
      %p95 = pneg %p89
      %p96 = scmp.eq.s32.totalorder %s12, 1
      %p97 = por %p95, %p96
      %p98 = scmp.ne.s32.totalorder %s90, %s93
      %p99 = scmp.eq.s32.totalorder %s12, 0
      %p100 = por %p98, %p99
      %p101 = scmp.ne.s32.totalorder %s90, %s93
      %p102 = scmp.eq.s32.totalorder %s17, 1
      %p103 = por %p101, %p102
      %p104 = scmp.ne.s32.totalorder %s93, %s94
      %p105 = scmp.eq.s32.totalorder %s17, 0
      %p106 = por %p104, %p105
      %p107 = scmp.ne.s32.totalorder %s93, %s94
      %p108 = scmp.eq.s32.totalorder %s18, 1
      %p109 = por %p107, %p108
      %p111 = scmp.ne.s32.totalorder %s94, %s110
      %p112 = scmp.eq.s32.totalorder %s18, 0
      %p113 = por %p111, %p112
      %p114 = scmp.le.s32.totalorder 1, %s12
      %p115 = scmp.lt.s32.totalorder %s12, 3
      %p116 = pnand %p114, %p115
      %p117 = pneg %p116
      // Predicated region
      $region9: #{forward.1} parent=5 // pred_check
        _
      $region10: #{forward.1} parent=5 // pred_check_branch
        %119 = sbr.rel (%p116) target = $region12
      $region11: #{forward.1} parent=5 // pred_region
        %s120 = ssub.s32 %s12, 1
        // Predicated region
        $region13: #{forward.1} parent=11 // pred_check
          %p121 = pneg %p33
        $region14: #{forward.1} parent=11 // pred_check_branch
          %123 = sbr.rel (%p121) target = $region16
        $region15: #{forward.1} parent=11 // pred_region
          _
        $region16: #{forward.1} parent=11 // pred_fallthru
          _
        // Predicated region
        $region17: #{forward.1} parent=11 // pred_check
          %p124 = pneg %p80
        $region18: #{forward.1} parent=11 // pred_check_branch
          %126 = sbr.rel (%p124) target = $region20
        $region19: #{forward.1} parent=11 // pred_region
          _
        $region20: #{forward.1} parent=11 // pred_fallthru
          _
      $region12: #{forward.1} parent=5 // pred_fallthru
        _
      %p127 = scmp.lt.s32.totalorder %s12, 2
      // Predicated region
      $region21: #{forward.1} parent=5 // pred_check
        %p128 = pneg %p127
      $region22: #{forward.1} parent=5 // pred_check_branch
        %130 = sbr.rel (%p128) target = $region24
      $region23: #{forward.1} parent=5 // pred_region
        // Predicated region
        $region25: #{forward.1} parent=23 // pred_check
          %p131 = pneg %p53
        $region26: #{forward.1} parent=23 // pred_check_branch
          %133 = sbr.rel (%p131) target = $region28
        $region27: #{forward.1} parent=23 // pred_region
          %p134 = scmp.lt.s32.totalorder %s12, 1
          %s135 = scalar_select %p134, %s12, 1
          %s136 = smul.addr %s135, 2
          %s137 = smul.addr %s136, 8
          %s138 = scalar_lea.vmem %s1, %s137
        $region28: #{forward.1} parent=23 // pred_fallthru
          _
      $region24: #{forward.1} parent=5 // pred_fallthru
        _
      %p139 = scmp.le.s32.totalorder 1, %s12
      %p140 = scmp.lt.s32.totalorder %s12, 3
      %p141 = pnand %p139, %p140
      %p142 = pneg %p141
      // Predicated region
      $region29: #{forward.1} parent=5 // pred_check
        _
      $region30: #{forward.1} parent=5 // pred_check_branch
        %144 = sbr.rel (%p141) target = $region32
      $region31: #{forward.1} parent=5 // pred_region
        %s145 = ssub.s32 %s12, 1
        %p146 = pneg %p33
        %p147 = pneg %p30
        %p148 = scmp.lt.s32.totalorder %s17, 1
        %s149 = scalar_select %p148, %s17, 1
        %s150 = smul.addr %s149, 2
        %s151 = smul.addr %s150, 8
        %s152 = scalar_lea.vmem %s1, %s151
        %p153 = pneg %p59
        %p154 = pneg %p56
        %p155 = pneg %p80
        %p156 = pneg %p77
        %p157 = pneg %p106
        %p158 = pneg %p103
        %s159 = sand.u32 %s93, 1
        %s160 = scalar_lea.sflag [#allocation3], %s159
        %s161 = sand.u32 %s93, 1
        %s162 = smul.addr %s161, 4
        %s163 = scalar_lea.vmem [#allocation2], %s162
        %p164 = scmp.lt.s32.totalorder %s17, 1
        %s165 = scalar_select %p164, %s17, 1
        %s166 = smul.addr %s165, 2
        %s167 = smul.addr %s166, 8
        %s168 = scalar_lea.vmem %s1, %s167
        %v169 = vld [vmem:[%s0] sm:$0xf]
        %v170 = vld [vmem:[%s168] sm:$0xff]
        %v171 = vld [vmem:[%s168 + $0x8] sm:$0xff]
        %vm172 = vcmask 130048
        %v174 = vsel %vm172, %v169, 0
        %176 = vmatprep.subr.mxu0 0.0
        %177 = vmatpush1.msra.mxu0 %v170
        %178 = vmatprep.subr.mxu0 0.0
        %179 = vmatpush1.msra.mxu0 %v171
        %180 = vmatprep.subr.mxu0 0.0
        %181 = vmatpush1.msra.mxu0 0.0
        %182 = vmatprep.subr.mxu0 0.0
        %183 = vmatpush1.msra.mxu0 0.0
        %184 = vmatprep.subr.mxu0 0.0
        %185 = vmatpush1.msra.mxu0 0.0
        %186 = vmatprep.subr.mxu0 0.0
        %187 = vmatpush1.msra.mxu0 0.0
        %188 = vmatprep.subr.mxu0 0.0
        %189 = vmatpush1.msra.mxu0 0.0
        %190 = vmatprep.subr.mxu0 0.0
        %191 = vmatpush1.msra.mxu0 0.0
        %192 = vmatprep.subr.mxu0 0.0
        %193 = vmatpush1.msra.mxu0 0.0
        %194 = vmatprep.subr.mxu0 0.0
        %195 = vmatpush1.msra.mxu0 0.0
        %196 = vmatprep.subr.mxu0 0.0
        %197 = vmatpush1.msra.mxu0 0.0
        %198 = vmatprep.subr.mxu0 0.0
        %199 = vmatpush1.msra.mxu0 0.0
        %200 = vmatprep.subr.mxu0 0.0
        %201 = vmatpush1.msra.mxu0 0.0
        %202 = vmatprep.subr.mxu0 0.0
        %203 = vmatpush1.msra.mxu0 0.0
        %204 = vmatprep.subr.mxu0 0.0
        %205 = vmatpush1.msra.mxu0 0.0
        %206 = vmatprep.subr.mxu0 0.0
        %207 = vmatpush1.msra.mxu0 0.0
        %208 = vmatprep.subr.mxu0 0.0
        %209 = vmatpush1.msra.mxu0 0.0
        %210 = vmatprep.subr.mxu0 0.0
        %211 = vmatpush1.msra.mxu0 0.0
        %212 = vmatprep.subr.mxu0 0.0
        %213 = vmatpush1.msra.mxu0 0.0
        %214 = vmatprep.subr.mxu0 0.0
        %215 = vmatpush1.msra.mxu0 0.0
        %216 = vmatprep.subr.mxu0 0.0
        %217 = vmatpush1.msra.mxu0 0.0
        %218 = vmatprep.subr.mxu0 0.0
        %219 = vmatpush1.msra.mxu0 0.0
        %220 = vmatprep.subr.mxu0 0.0
        %221 = vmatpush1.msra.mxu0 0.0
        %222 = vmatprep.subr.mxu0 0.0
        %223 = vmatpush1.msra.mxu0 0.0
        %224 = vmatprep.subr.mxu0 0.0
        %225 = vmatpush1.msra.mxu0 0.0
        %226 = vmatprep.subr.mxu0 0.0
        %227 = vmatpush1.msra.mxu0 0.0
        %228 = vmatprep.subr.mxu0 0.0
        %229 = vmatpush1.msra.mxu0 0.0
        %230 = vmatprep.subr.mxu0 0.0
        %231 = vmatpush1.msra.mxu0 0.0
        %232 = vmatprep.subr.mxu0 0.0
        %233 = vmatpush1.msra.mxu0 0.0
        %234 = vmatprep.subr.mxu0 0.0
        %235 = vmatpush1.msra.mxu0 0.0
        %236 = vmatprep.subr.mxu0 0.0
        %237 = vmatpush1.msra.mxu0 0.0
        %238 = vmatprep.subr.mxu0 0.0
        %239 = vmatpush1.msra.mxu0 0.0
        %240 = vmatprep.mubr.f32.mxu0 0.0
        %241 = vmatmul.mubr.f32.gmra.mrb[0].mxu0 %v174
        %v242 = vpop.f32.mrb[0].mxu0
        %v243 = vadd.f32 0.0, %v242
        %v244 = vpop.f32.mrb[0].mxu0
        %245 = vdwg.mxu0
        %v246 = vld [vmem:[%s2] sm:$0xff]
        %v247 = vld [vmem:[%s2 + $0x8] sm:$0xff]
        %v248 = vld [vmem:[%s2 + $0x10] sm:$0xff]
        %v249 = vld [vmem:[%s2 + $0x18] sm:$0xff]
        %v250 = vld [vmem:[%s2 + $0x20] sm:$0x1]
        %v251 = vld [vmem:[%s2 + $0x21] sm:$0x1]
        %v252 = vld [vmem:[%s2 + $0x22] sm:$0x1]
        %v253 = vld [vmem:[%s2 + $0x23] sm:$0x1]
        %v254 = vld [vmem:[%s2 + $0x24] sm:$0x1]
        %v255 = vlaneseq
        %v256 = vshrl.u32 %v255, 7
        %v257 = vsub.s32 0, %v256
        %v258 = vrot.slane %v250, %v257
        %vm259 = vcmask 261120
        %v261 = vsel %vm259, %v243, 0
        %263 = vmatprep.subr.mxu0 0.0
        %264 = vmatpush1.msra.mxu0 %v246
        %265 = vmatprep.subr.mxu0 0.0
        %266 = vmatpush1.msra.mxu0 %v247
        %267 = vmatprep.subr.mxu0 0.0
        %268 = vmatpush1.msra.mxu0 %v248
        %269 = vmatprep.subr.mxu0 0.0
        %270 = vmatpush1.msra.mxu0 %v249
        %271 = vmatprep.subr.mxu0 0.0
        %272 = vmatpush1.msra.mxu0 0.0
        %273 = vmatprep.subr.mxu0 0.0
        %274 = vmatpush1.msra.mxu0 0.0
        %275 = vmatprep.subr.mxu0 0.0
        %276 = vmatpush1.msra.mxu0 0.0
        %277 = vmatprep.subr.mxu0 0.0
        %278 = vmatpush1.msra.mxu0 0.0
        %279 = vmatprep.subr.mxu0 0.0
        %280 = vmatpush1.msra.mxu0 0.0
        %281 = vmatprep.subr.mxu0 0.0
        %282 = vmatpush1.msra.mxu0 0.0
        %283 = vmatprep.subr.mxu0 0.0
        %284 = vmatpush1.msra.mxu0 0.0
        %285 = vmatprep.subr.mxu0 0.0
        %286 = vmatpush1.msra.mxu0 0.0
        %287 = vmatprep.subr.mxu0 0.0
        %288 = vmatpush1.msra.mxu0 0.0
        %289 = vmatprep.subr.mxu0 0.0
        %290 = vmatpush1.msra.mxu0 0.0
        %291 = vmatprep.subr.mxu0 0.0
        %292 = vmatpush1.msra.mxu0 0.0
        %293 = vmatprep.subr.mxu0 0.0
        %294 = vmatpush1.msra.mxu0 0.0
        %295 = vmatprep.subr.mxu0 0.0
        %296 = vmatpush1.msra.mxu0 0.0
        %297 = vmatprep.subr.mxu0 0.0
        %298 = vmatpush1.msra.mxu0 0.0
        %299 = vmatprep.subr.mxu0 0.0
        %300 = vmatpush1.msra.mxu0 0.0
        %301 = vmatprep.subr.mxu0 0.0
        %302 = vmatpush1.msra.mxu0 0.0
        %303 = vmatprep.subr.mxu0 0.0
        %304 = vmatpush1.msra.mxu0 0.0
        %305 = vmatprep.subr.mxu0 0.0
        %306 = vmatpush1.msra.mxu0 0.0
        %307 = vmatprep.subr.mxu0 0.0
        %308 = vmatpush1.msra.mxu0 0.0
        %309 = vmatprep.subr.mxu0 0.0
        %310 = vmatpush1.msra.mxu0 0.0
        %311 = vmatprep.subr.mxu0 0.0
        %312 = vmatpush1.msra.mxu0 0.0
        %313 = vmatprep.subr.mxu0 0.0
        %314 = vmatpush1.msra.mxu0 0.0
        %315 = vmatprep.subr.mxu0 0.0
        %316 = vmatpush1.msra.mxu0 0.0
        %317 = vmatprep.subr.mxu0 0.0
        %318 = vmatpush1.msra.mxu0 0.0
        %319 = vmatprep.subr.mxu0 0.0
        %320 = vmatpush1.msra.mxu0 0.0
        %321 = vmatprep.subr.mxu0 0.0
        %322 = vmatpush1.msra.mxu0 0.0
        %323 = vmatprep.subr.mxu0 0.0
        %324 = vmatpush1.msra.mxu0 0.0
        %325 = vmatprep.subr.mxu0 0.0
        %326 = vmatpush1.msra.mxu0 0.0
        %327 = vmatprep.mubr.f32.mxu0 0.0
        %328 = vmatmul.mubr.f32.gmra.mrb[0].mxu0 %v261
        %v329 = vpop.f32.mrb[0].mxu0
        %v330 = vadd.f32 %v258, %v329
        %v331 = vpop.f32.mrb[0].mxu0
        %332 = vdwg.mxu0
        %vm333 = vcmask 257024
        %v334 = vsel %vm333, %v330, 0.0
        %335 = vadd.xlane.f32.xlu0 %v334
        %v336 = vpop.xlane.xlu0 %335
        %v337 = vrcp.pop 32.0
        %v338 = vmul.f32 %v336, %v337
        %v339 = vsub.f32 %v330, %v338
        %v340 = vmul.f32 %v339, %v339
        %v341 = vsel %vm333, %v340, 0.0
        %342 = vadd.xlane.f32.xlu0 %v341
        %v343 = vpop.xlane.xlu0 %342
        %v344 = vmul.f32 %v343, %v337
        %v345 = vadd.f32 %v344, 1e-05
        %v346 = vrsqrt.pop %v345
        %v347 = vmul.f32 %v339, %v346
        %v348 = vlaneseq
        %v349 = vshrl.u32 %v348, 7
        %v350 = vsub.s32 0, %v349
        %v351 = vrot.slane %v251, %v350
        %v352 = vmul.f32 %v347, %v351
        %v353 = vlaneseq
        %v354 = vshrl.u32 %v353, 7
        %v355 = vsub.s32 0, %v354
        %v356 = vrot.slane %v252, %v355
        %v357 = vadd.f32 %v352, %v356
        %vm358 = vcmp.gt.f32.partialorder %v357, 0.0
        %v359 = vmin.f32 %v357, 0.0
        %v360 = vmul.f32 %v359, 1.442695
        %v361 = vpow.pop %v360
        %v362 = vsub.f32 %v361, 1.0
        %v363 = vsel %vm358, %v357, %v362
        %v366 = vunpack.c.l.s4 1966171168
        %v367 = vunpack.c.0.s8 %v366
        %v368 = vlaneseq
        %v369 = vshrl.u32 %v368, 7
        %v370 = vsub.s32 %v367, %v369
        %v371 = vrot.slane %v363, %v370
        %v372 = vcombine.high %v371, %v371
        %v374 = vunpack.c.l.s4 1966171168
        %v375 = vunpack.c.0.s8 %v374
        %v376 = vlaneseq
        %v377 = vshrl.u32 %v376, 7
        %v378 = vsub.s32 %v375, %v377
        %v379 = vrot.slane %v371, %v378
        %v381 = vunpack.c.l.s4 1966171168
        %v382 = vunpack.c.0.s8 %v381
        %v383 = vlaneseq
        %v384 = vshrl.u32 %v383, 7
        %v385 = vsub.s32 %v382, %v384
        %v386 = vrot.slane %v372, %v385
        %v387 = vcombine.high %v379, %v379
        %v388 = vcombine.high %v386, %v386
        %v389 = vlaneseq
        %v390 = vshrl.u32 %v389, 7
        %v391 = vsub.s32 0, %v390
        %v392 = vrot.slane %v379, %v391
        %v393 = vlaneseq
        %v394 = vshrl.u32 %v393, 7
        %v395 = vsub.s32 0, %v394
        %v396 = vrot.slane %v386, %v395
        %v397 = vlaneseq
        %v398 = vshrl.u32 %v397, 7
        %v399 = vsub.s32 0, %v398
        %v400 = vrot.slane %v387, %v399
        %v401 = vlaneseq
        %v402 = vshrl.u32 %v401, 7
        %v403 = vsub.s32 0, %v402
        %v404 = vrot.slane %v388, %v403
        %v409 = vmul.f32 %v392, %v363
        %v410 = vmul.f32 %v396, %v363
        %v411 = vmul.f32 %v400, %v363
        %v412 = vmul.f32 %v404, %v363
        %v413 = vlaneseq
        %v414 = vshrl.u32 %v413, 7
        %v415 = vsub.s32 0, %v414
        %v416 = vrot.slane %v253, %v415
        %v417 = vmul.f32 %v409, %v416
        %v418 = vmul.f32 %v410, %v416
        %v419 = vmul.f32 %v411, %v416
        %v420 = vmul.f32 %v412, %v416
        %v421 = vsel %vm333, %v417, 0.0
        %422 = vadd.xlane.f32.xlu0 %v421
        %v423 = vpop.xlane.xlu0 %422
        %v424 = vsel %vm333, %v418, 0.0
        %425 = vadd.xlane.f32.xlu0 %v424
        %v426 = vpop.xlane.xlu0 %425
        %v427 = vsel %vm333, %v419, 0.0
        %428 = vadd.xlane.f32.xlu0 %v427
        %v429 = vpop.xlane.xlu0 %428
        %v430 = vsel %vm333, %v420, 0.0
        %431 = vadd.xlane.f32.xlu0 %v430
        %v432 = vpop.xlane.xlu0 %431
        %s434 = vtos %v254
        %v435 = vstv %s434
        %v437 = vadd.f32 %v423, %v435
        %v438 = vadd.f32 %v426, %v435
        %v439 = vadd.f32 %v429, %v435
        %v440 = vadd.f32 %v432, %v435
        %v441 = vxor.u32 %v437, 2147483648
        %v442 = vxor.u32 %v438, 2147483648
        %v443 = vxor.u32 %v439, 2147483648
        %v444 = vxor.u32 %v440, 2147483648
        %v445 = vmul.f32 %v441, 1.442695
        %v446 = vpow.pop %v445
        %v447 = vmul.f32 %v442, 1.442695
        %v448 = vpow.pop %v447
        %v449 = vmul.f32 %v443, 1.442695
        %v450 = vpow.pop %v449
        %v451 = vmul.f32 %v444, 1.442695
        %v452 = vpow.pop %v451
        %v453 = vadd.f32 %v446, 1.0
        %v454 = vadd.f32 %v448, 1.0
        %v455 = vadd.f32 %v450, 1.0
        %v456 = vadd.f32 %v452, 1.0
        %v457 = vrcp.pop %v453
        %v458 = vmul.f32 1.0, %v457
        %v459 = vrcp.pop %v454
        %v460 = vmul.f32 1.0, %v459
        %v461 = vrcp.pop %v455
        %v462 = vmul.f32 1.0, %v461
        %v463 = vrcp.pop %v456
        %v464 = vmul.f32 1.0, %v463
        %v469 = vlaneseq
        %v470 = vand.u32 %v469, 127
        %v471 = vlaneseq
        %v472 = vshrl.u32 %v471, 7
        %v473 = vsub.s32 %v470, %v472
        %v474 = vrot.slane %v458, %v473
        %v475 = vlaneseq
        %v476 = vshrl.u32 %v475, 7
        %v477 = vsub.s32 %v470, %v476
        %v478 = vrot.slane %v460, %v477
        %v479 = vlaneseq
        %v480 = vshrl.u32 %v479, 7
        %v481 = vsub.s32 %v470, %v480
        %v482 = vrot.slane %v462, %v481
        %v483 = vlaneseq
        %v484 = vshrl.u32 %v483, 7
        %v485 = vsub.s32 %v470, %v484
        %v486 = vrot.slane %v464, %v485
        %vm487 = vcmask 1041409
        %v488 = vsel %vm487, %v478, %v474
        %vm489 = vcmask 1042434
        %v490 = vsel %vm489, %v482, %v488
        %vm491 = vcmask 1043459
        %v492 = vsel %vm491, %v486, %v490
        %vm494 = vcmask 27648
        %495 = vst.msk [vmem:[%s163] sm:$0xf] %vm494, %v492
        %s496 = sand.u32 %s93, 1
        %s497 = scalar_lea.sflag [#allocation3], %s496
        %s498 = sand.u32 %s93, 1
        %s499 = smul.addr %s498, 4
        %s500 = scalar_lea.vmem [#allocation2], %s499
        // Predicated region
        $region33: #{forward.1} parent=31 // pred_check
          %p501 = pneg %p103
        $region34: #{forward.1} parent=31 // pred_check_branch
          %503 = sbr.rel (%p501) target = $region36
        $region35: #{forward.1} parent=31 // pred_region
          %s505 = ssub.s32 64, 64
          %506 = vsyncadd %s497, %s505
          %s507 = smul.addr %s17, 64
          %s508 = scalar_lea.hbm %s3, %s507
          %s510 = sshll.u32 %s500, 4
          %s511 = int_to_ptr.vmem [resolvable:$true] %s510
          %513 = dma.vmem_to_hbm [thread:$0]  %s511, 64, %s508, %s497
        $region36: #{forward.1} parent=31 // pred_fallthru
          _
      $region32: #{forward.1} parent=5 // pred_fallthru
        _
      %p514 = scmp.le.s32.totalorder 2, %s12
      // Predicated region
      $region37: #{forward.1} parent=5 // pred_check
        %p515 = pneg %p514
      $region38: #{forward.1} parent=5 // pred_check_branch
        %517 = sbr.rel (%p515) target = $region40
      $region39: #{forward.1} parent=5 // pred_region
        %s518 = ssub.s32 %s12, 2
        // Predicated region
        $region41: #{forward.1} parent=39 // pred_check
          %p519 = pneg %p109
        $region42: #{forward.1} parent=39 // pred_check_branch
          %521 = sbr.rel (%p519) target = $region44
        $region43: #{forward.1} parent=39 // pred_region
          %s522 = sand.u32 %s94, 1
          %s523 = scalar_lea.sflag [#allocation3], %s522
          %s524 = sand.u32 %s94, 1
          %s525 = smul.addr %s524, 4
          %s526 = scalar_lea.vmem [#allocation2], %s525
          %527 = dma.done %s523, 64
        $region44: #{forward.1} parent=39 // pred_fallthru
          _
      $region40: #{forward.1} parent=5 // pred_fallthru
        _
    $region6: #{forward.1} parent=1 // loop_footer
      %s16 = sadd.s32 1, %s12
    $region7: #{forward.1} parent=1 // loop_footer_branch
      %11 = sbr.rel target = $region3
    $region8: #{forward.1} parent=1 // loop_exit
      _
    %528 = vsyncpa [#allocation3], 1
    %s529 = scalar_lea.sflag [#allocation3], 1
    %530 = vsyncpa %s529, 1

</llo_original>
